<compile_context>
chip_gen: v7x
topology: tpu7x:2x2x1
jax: 0.10.0
libtpu: 0.0.40
codegen_flags: <defaults>
</compile_context>

<pallas_src>
import functools

import jax
import jax.numpy as jnp
from jax.experimental import pallas as pl
from jax.experimental.pallas import tpu as pltpu


# ----------------------------- in-kernel helpers -----------------------------

def _layer_norm(x, gamma, beta, eps=1e-6):
    mu = jnp.mean(x, axis=-1, keepdims=True)
    var = jnp.mean(jnp.square(x - mu), axis=-1, keepdims=True)
    return (x - mu) * jax.lax.rsqrt(var + eps) * gamma + beta


# --------------------------------- kernels -----------------------------------

def embed_ln_kernel(idx_ref, emb_ref, pos_ref, g_ref, b_ref, o_ref):
    # idx: (S, 1) int32; emb: (V, D); pos: (S, D); g/b: (1, D); o: (S, D)
    seq = idx_ref.shape[0]
    vocab = emb_ref.shape[0]
    lane_ids = jax.lax.broadcasted_iota(jnp.int32, (seq, vocab), 1)
    onehot = (idx_ref[...] == lane_ids).astype(jnp.float32)        # (S, V)
    x = jnp.dot(onehot, emb_ref[...], preferred_element_type=jnp.float32)
    x = x + pos_ref[...]                                           # pos enc
    o_ref[...] = _layer_norm(x, g_ref[...], b_ref[...])


def mha_block_kernel(x_ref, wq_ref, bq_ref, wk_ref, bk_ref, wv_ref, bv_ref,
                     wo_ref, bo_ref, g_ref, be_ref, o_ref, *, n_head, d_k, d_v):
    # x: (S, D); wq/wk: (D, H*dk); wv: (D, H*dv); wo: (H*dv, D)
    x = x_ref[...]
    q = jnp.dot(x, wq_ref[...], preferred_element_type=jnp.float32) + bq_ref[...]
    k = jnp.dot(x, wk_ref[...], preferred_element_type=jnp.float32) + bk_ref[...]
    v = jnp.dot(x, wv_ref[...], preferred_element_type=jnp.float32) + bv_ref[...]

    scale = 1.0 / (d_k ** 0.5)
    heads = []
    for h in range(n_head):                      # tiny static unroll
        qh = q[:, h * d_k:(h + 1) * d_k]
        kh = k[:, h * d_k:(h + 1) * d_k]
        vh = v[:, h * d_v:(h + 1) * d_v]
        # scores = qh @ kh^T via dot_general (no explicit transpose needed)
        s = jax.lax.dot_general(qh, kh, (((1,), (1,)), ((), ())),
                                preferred_element_type=jnp.float32) * scale
        s = s - jnp.max(s, axis=-1, keepdims=True)
        p = jnp.exp(s)
        p = p / jnp.sum(p, axis=-1, keepdims=True)
        heads.append(jnp.dot(p, vh, preferred_element_type=jnp.float32))
    ctx = jnp.concatenate(heads, axis=1)         # (S, H*dv)

    y = jnp.dot(ctx, wo_ref[...], preferred_element_type=jnp.float32)
    y = y + bo_ref[...] + x                      # residual
    o_ref[...] = _layer_norm(y, g_ref[...], be_ref[...])


def ffn_block_kernel(x_ref, w1_ref, b1_ref, w2_ref, b2_ref, g_ref, be_ref, o_ref):
    # x: (S, D); w1: (D, D_inner); w2: (D_inner, D)
    x = x_ref[...]
    h = jnp.dot(x, w1_ref[...], preferred_element_type=jnp.float32) + b1_ref[...]
    h = jnp.maximum(h, 0.0)
    y = jnp.dot(h, w2_ref[...], preferred_element_type=jnp.float32) + b2_ref[...] + x
    o_ref[...] = _layer_norm(y, g_ref[...], be_ref[...])


def pool_cls_kernel(x_ref, wc_ref, bc_ref, o_ref):
    # x: (B, S, D); wc: (D, C); bc: (1, C); o: (B, C)
    batch = x_ref.shape[0]
    rows = [jnp.mean(x_ref[b], axis=0, keepdims=True) for b in range(batch)]
    pooled = jnp.concatenate(rows, axis=0)                         # (B, D)
    logits = jnp.dot(pooled, wc_ref[...],
                     preferred_element_type=jnp.float32) + bc_ref[...]
    o_ref[...] = jnp.maximum(logits, 0.0)                          # ReLU
    # nn.Dropout after ReLU is identity at inference.


# --------------------------------- wrapper ------------------------------------

def text_subnet_attention_forward(src_seq, params, *, n_head, d_k, d_v):
    batch, seq = src_seq.shape
    vocab, d_model = params['emb'].shape
    num_class = params['wc'].shape[1]

    idx = src_seq.astype(jnp.int32).reshape(batch, seq, 1)
    pos = params['pos_table'][:seq]                                # (S, D)

    def batched(shape):   # batch dim squeezed out of the kernel block
        return pl.BlockSpec((None,) + shape, lambda b: (b,) + (0,) * len(shape))

    def resident(shape):  # full array resident in VMEM across the batch grid
        return pl.BlockSpec(shape, lambda b: (0,) * len(shape))

    par = pltpu.CompilerParams(dimension_semantics=("parallel",))

    # 1) token embedding + positional encoding + input LayerNorm --------------
    x = pl.pallas_call(
        embed_ln_kernel,
        out_shape=jax.ShapeDtypeStruct((batch, seq, d_model), jnp.float32),
        grid=(batch,),
        in_specs=[batched((seq, 1)), resident((vocab, d_model)),
                  resident((seq, d_model)),
                  resident((1, d_model)), resident((1, d_model))],
        out_specs=batched((seq, d_model)),
        compiler_params=par,
    )(idx, params['emb'], pos, params['ln0_g'], params['ln0_b'])

    # 2) transformer encoder layers -------------------------------------------
    for lp in params['layers']:
        hd_k = n_head * d_k
        hd_v = n_head * d_v
        x = pl.pallas_call(
            functools.partial(mha_block_kernel, n_head=n_head, d_k=d_k, d_v=d_v),
            out_shape=jax.ShapeDtypeStruct((batch, seq, d_model), jnp.float32),
            grid=(batch,),
            in_specs=[batched((seq, d_model)),
                      resident((d_model, hd_k)), resident((1, hd_k)),
                      resident((d_model, hd_k)), resident((1, hd_k)),
                      resident((d_model, hd_v)), resident((1, hd_v)),
                      resident((hd_v, d_model)), resident((1, d_model)),
                      resident((1, d_model)), resident((1, d_model))],
            out_specs=batched((seq, d_model)),
            compiler_params=par,
        )(x, lp['wq'], lp['bq'], lp['wk'], lp['bk'], lp['wv'], lp['bv'],
          lp['wo'], lp['bo'], lp['ln1_g'], lp['ln1_b'])

        d_inner = lp['w1'].shape[1]
        x = pl.pallas_call(
            ffn_block_kernel,
            out_shape=jax.ShapeDtypeStruct((batch, seq, d_model), jnp.float32),
            grid=(batch,),
            in_specs=[batched((seq, d_model)),
                      resident((d_model, d_inner)), resident((1, d_inner)),
                      resident((d_inner, d_model)), resident((1, d_model)),
                      resident((1, d_model)), resident((1, d_model))],
            out_specs=batched((seq, d_model)),
            compiler_params=par,
        )(x, lp['w1'], lp['b1'], lp['w2'], lp['b2'], lp['ln2_g'], lp['ln2_b'])

    # 3) mean over sequence + classifier + ReLU --------------------------------
    out = pl.pallas_call(
        pool_cls_kernel,
        out_shape=jax.ShapeDtypeStruct((batch, num_class), jnp.float32),
        grid=(1,),
        in_specs=[pl.BlockSpec((batch, seq, d_model), lambda i: (0, 0, 0)),
                  pl.BlockSpec((d_model, num_class), lambda i: (0, 0)),
                  pl.BlockSpec((1, num_class), lambda i: (0, 0))],
        out_specs=pl.BlockSpec((batch, num_class), lambda i: (0, 0)),
    )(x, params['wc'], params['bc'])
    return out


# ----------------------------- params & reference -----------------------------

def sinusoid_table(n_position, d_hid):
    pos = jnp.arange(n_position, dtype=jnp.float32)[:, None]
    i = jnp.arange(d_hid, dtype=jnp.float32)[None, :]
    angle = pos / jnp.power(10000.0, 2.0 * jnp.floor(i / 2.0) / d_hid)
    even = (jnp.arange(d_hid) % 2 == 0)[None, :]
    return jnp.where(even, jnp.sin(angle), jnp.cos(angle)).astype(jnp.float32)


def init_params(key, *, vocab, d_model, n_layers, n_head, d_k, d_v, d_inner,
                num_class, n_position):
    def linear(k, fan_in, fan_out):
        kw, kb = jax.random.split(k)
        std = (2.0 / (fan_in + fan_out)) ** 0.5
        return (std * jax.random.normal(kw, (fan_in, fan_out), jnp.float32),
                0.02 * jax.random.normal(kb, (1, fan_out), jnp.float32))

    keys = jax.random.split(key, 3 + n_layers)
    params = {
        'emb': 0.1 * jax.random.normal(keys[0], (vocab, d_model), jnp.float32),
        'pos_table': sinusoid_table(n_position, d_model),
        'ln0_g': jnp.ones((1, d_model), jnp.float32),
        'ln0_b': jnp.zeros((1, d_model), jnp.float32),
        'layers': [],
    }
    for l in range(n_layers):
        ks = jax.random.split(keys[2 + l], 6)
        wq, bq = linear(ks[0], d_model, n_head * d_k)
        wk, bk = linear(ks[1], d_model, n_head * d_k)
        wv, bv = linear(ks[2], d_model, n_head * d_v)
        wo, bo = linear(ks[3], n_head * d_v, d_model)
        w1, b1 = linear(ks[4], d_model, d_inner)
        w2, b2 = linear(ks[5], d_inner, d_model)
        params['layers'].append(dict(
            wq=wq, bq=bq, wk=wk, bk=bk, wv=wv, bv=bv, wo=wo, bo=bo,
            ln1_g=jnp.ones((1, d_model), jnp.float32),
            ln1_b=jnp.zeros((1, d_model), jnp.float32),
            w1=w1, b1=b1, w2=w2, b2=b2,
            ln2_g=jnp.ones((1, d_model), jnp.float32),
            ln2_b=jnp.zeros((1, d_model), jnp.float32)))
    wc, bc = linear(keys[1], d_model, num_class)
    params['wc'], params['bc'] = wc, bc
    return params


def reference_forward(src_seq, params, *, n_head, d_k, d_v):
    hp = jax.lax.Precision.HIGHEST
    B, S = src_seq.shape
    x = params['emb'][src_seq] + params['pos_table'][:S][None, :, :]
    x = _layer_norm(x, params['ln0_g'], params['ln0_b'])
    for lp in params['layers']:
        res = x
        q = jnp.einsum('bsd,de->bse', x, lp['wq'], precision=hp) + lp['bq']
        k = jnp.einsum('bsd,de->bse', x, lp['wk'], precision=hp) + lp['bk']
        v = jnp.einsum('bsd,de->bse', x, lp['wv'], precision=hp) + lp['bv']
        q = q.reshape(B, S, n_head, d_k).transpose(0, 2, 1, 3)
        k = k.reshape(B, S, n_head, d_k).transpose(0, 2, 1, 3)
        v = v.reshape(B, S, n_head, d_v).transpose(0, 2, 1, 3)
        s = jnp.einsum('bhsd,bhtd->bhst', q, k, precision=hp) * (1.0 / (d_k ** 0.5))
        p = jax.nn.softmax(s, axis=-1)
        ctx = jnp.einsum('bhst,bhtd->bhsd', p, v, precision=hp)
        ctx = ctx.transpose(0, 2, 1, 3).reshape(B, S, n_head * d_v)
        y = jnp.einsum('bse,ed->bsd', ctx, lp['wo'], precision=hp) + lp['bo'] + res
        x = _layer_norm(y, lp['ln1_g'], lp['ln1_b'])
        res = x
        h = jnp.maximum(
            jnp.einsum('bsd,df->bsf', x, lp['w1'], precision=hp) + lp['b1'], 0.0)
        y = jnp.einsum('bsf,fd->bsd', h, lp['w2'], precision=hp) + lp['b2'] + res
        x = _layer_norm(y, lp['ln2_g'], lp['ln2_b'])
    pooled = jnp.mean(x, axis=1)
    logits = jnp.dot(pooled, params['wc'], precision=hp) + params['bc']
    return jnp.maximum(logits, 0.0)


# ----------------------------------- main --------------------------------------

if __name__ == "__main__":
    batch, seq = 2, 8
    vocab, d_model = 50, 32
    n_layers, n_head, d_k, d_v, d_inner = 2, 2, 16, 16, 64
    num_class, n_position = 2, 64

    key = jax.random.PRNGKey(0)
    kp, ks = jax.random.split(key)
    params = init_params(kp, vocab=vocab, d_model=d_model, n_layers=n_layers,
                         n_head=n_head, d_k=d_k, d_v=d_v, d_inner=d_inner,
                         num_class=num_class, n_position=n_position)
    src_seq = jax.random.randint(ks, (batch, seq), 1, vocab, dtype=jnp.int32)

    out = text_subnet_attention_forward(src_seq, params,
                                        n_head=n_head, d_k=d_k, d_v=d_v)
    out = jax.block_until_ready(out)

    ref = jax.block_until_ready(
        reference_forward(src_seq, params, n_head=n_head, d_k=d_k, d_v=d_v))

    assert out.shape == (batch, num_class)
    max_diff = float(jnp.max(jnp.abs(out - ref)))
    assert jnp.allclose(out, ref, atol=2e-3, rtol=2e-3), f"max diff {max_diff}"
    print("KERNEL_OK")
</pallas_src>

<mosaic_0001>
module attributes {stable_mosaic.version = 11 : i64} {
  func.func @embed_ln_kernel(%arg0: i32, %arg1: memref<1x8x1xi32, #tpu.memory_space<vmem>>, %arg2: memref<50x32xf32, #tpu.memory_space<vmem>>, %arg3: memref<8x32xf32, #tpu.memory_space<vmem>>, %arg4: memref<1x32xf32, #tpu.memory_space<vmem>>, %arg5: memref<1x32xf32, #tpu.memory_space<vmem>>, %arg6: memref<1x8x32xf32, #tpu.memory_space<vmem>>) attributes {dimension_semantics = [#tpu.dimension_semantics<parallel>], iteration_bounds = array<i64: 2>, scalar_prefetch = 0 : i64, scratch_operands = 0 : i64, tpu.core_type = #tpu.core_type<tc>, window_params = [{transform_indices = @transform_0, window_bounds = array<i64: 1, 8, 1>}, {pipeline_mode = #tpu.pipeline_mode<synchronous>, transform_indices = @transform_1, window_bounds = array<i64: 50, 32>}, {pipeline_mode = #tpu.pipeline_mode<synchronous>, transform_indices = @transform_2, window_bounds = array<i64: 8, 32>}, {pipeline_mode = #tpu.pipeline_mode<synchronous>, transform_indices = @transform_3, window_bounds = array<i64: 1, 32>}, {pipeline_mode = #tpu.pipeline_mode<synchronous>, transform_indices = @transform_4, window_bounds = array<i64: 1, 32>}, {transform_indices = @transform_5, window_bounds = array<i64: 1, 8, 32>}]} {
    %0 = tpu.iota {dimensions = array<i32: 1>} : vector<8x50xi32>
    %c0 = arith.constant 0 : index
    %c0_0 = arith.constant 0 : index
    %c0_1 = arith.constant 0 : index
    %1 = vector.load %arg1[%c0, %c0_0, %c0_1] : memref<1x8x1xi32, #tpu.memory_space<vmem>>, vector<1x8x1xi32>
    %2 = vector.shape_cast %1 : vector<1x8x1xi32> to vector<8x1xi32>
    %3 = vector.broadcast %2 : vector<8x1xi32> to vector<8x50xi32>
    %4 = arith.cmpi eq, %3, %0 : vector<8x50xi32>
    %5 = arith.extui %4 : vector<8x50xi1> to vector<8x50xi32>
    %6 = arith.sitofp %5 : vector<8x50xi32> to vector<8x50xf32>
    %c0_2 = arith.constant 0 : index
    %c0_3 = arith.constant 0 : index
    %7 = vector.load %arg2[%c0_2, %c0_3] : memref<50x32xf32, #tpu.memory_space<vmem>>, vector<50x32xf32>
    %cst = arith.constant dense<0.000000e+00> : vector<8x32xf32>
    %8 = tpu.matmul %6, %7, %cst {dimension_numbers = #tpu.dot_dimension_numbers<[1], [0], [0], [1], [0, 0, 1, 1], [], []>} : vector<8x50xf32>, vector<50x32xf32>, vector<8x32xf32> -> vector<8x32xf32>
    %c0_4 = arith.constant 0 : index
    %c0_5 = arith.constant 0 : index
    %9 = vector.load %arg3[%c0_4, %c0_5] : memref<8x32xf32, #tpu.memory_space<vmem>>, vector<8x32xf32>
    %10 = arith.addf %8, %9 : vector<8x32xf32>
    %c0_6 = arith.constant 0 : index
    %c0_7 = arith.constant 0 : index
    %11 = vector.load %arg4[%c0_6, %c0_7] : memref<1x32xf32, #tpu.memory_space<vmem>>, vector<1x32xf32>
    %c0_8 = arith.constant 0 : index
    %c0_9 = arith.constant 0 : index
    %12 = vector.load %arg5[%c0_8, %c0_9] : memref<1x32xf32, #tpu.memory_space<vmem>>, vector<1x32xf32>
    %cst_10 = arith.constant dense<0.000000e+00> : vector<8xf32>
    %13 = vector.multi_reduction <add>, %10, %cst_10 [1] : vector<8x32xf32> to vector<8xf32>
    %14 = vector.shape_cast %13 : vector<8xf32> to vector<8x1xf32>
    %cst_11 = arith.constant 3.200000e+01 : f32
    %15 = vector.broadcast %cst_11 : f32 to vector<8x1xf32>
    %16 = arith.divf %14, %15 : vector<8x1xf32>
    %17 = vector.broadcast %16 : vector<8x1xf32> to vector<8x32xf32>
    %18 = arith.subf %10, %17 : vector<8x32xf32>
    %19 = arith.mulf %18, %18 : vector<8x32xf32>
    %cst_12 = arith.constant dense<0.000000e+00> : vector<8xf32>
    %20 = vector.multi_reduction <add>, %19, %cst_12 [1] : vector<8x32xf32> to vector<8xf32>
    %21 = vector.shape_cast %20 : vector<8xf32> to vector<8x1xf32>
    %cst_13 = arith.constant 3.200000e+01 : f32
    %22 = vector.broadcast %cst_13 : f32 to vector<8x1xf32>
    %23 = arith.divf %21, %22 : vector<8x1xf32>
    %24 = vector.broadcast %16 : vector<8x1xf32> to vector<8x32xf32>
    %25 = arith.subf %10, %24 : vector<8x32xf32>
    %cst_14 = arith.constant 9.99999997E-7 : f32
    %26 = vector.broadcast %cst_14 : f32 to vector<8x1xf32>
    %27 = arith.addf %23, %26 : vector<8x1xf32>
    %28 = math.rsqrt %27 : vector<8x1xf32>
    %29 = vector.broadcast %28 : vector<8x1xf32> to vector<8x32xf32>
    %30 = arith.mulf %25, %29 : vector<8x32xf32>
    %31 = vector.broadcast %11 : vector<1x32xf32> to vector<8x32xf32>
    %32 = arith.mulf %30, %31 : vector<8x32xf32>
    %33 = vector.broadcast %12 : vector<1x32xf32> to vector<8x32xf32>
    %34 = arith.addf %32, %33 : vector<8x32xf32>
    %c0_15 = arith.constant 0 : index
    %c0_16 = arith.constant 0 : index
    %c0_17 = arith.constant 0 : index
    %35 = vector.load %arg6[%c0_15, %c0_16, %c0_17] : memref<1x8x32xf32, #tpu.memory_space<vmem>>, vector<1x8x32xf32>
    %36 = vector.shape_cast %35 : vector<1x8x32xf32> to vector<8x32xf32>
    %37 = vector.shape_cast %34 : vector<8x32xf32> to vector<1x8x32xf32>
    tpu.vector_store %arg6[%c0_15, %c0_16, %c0_17], %37 {strides = array<i32>} : memref<1x8x32xf32, #tpu.memory_space<vmem>>, vector<1x8x32xf32>,
    return
  }
  func.func @transform_0(%arg0: i32) -> (i32, i32, i32) {
    %c0_i32 = arith.constant 0 : i32
    %c0_i32_0 = arith.constant 0 : i32
    %c0_i32_1 = arith.constant 0 : i32
    return %arg0, %c0_i32, %c0_i32_0 : i32, i32, i32
  }
  func.func @transform_1(%arg0: i32) -> (i32, i32) {
    %c0_i32 = arith.constant 0 : i32
    %c0_i32_0 = arith.constant 0 : i32
    %c0_i32_1 = arith.constant 0 : i32
    return %c0_i32, %c0_i32_0 : i32, i32
  }
  func.func @transform_2(%arg0: i32) -> (i32, i32) {
    %c0_i32 = arith.constant 0 : i32
    %c0_i32_0 = arith.constant 0 : i32
    %c0_i32_1 = arith.constant 0 : i32
    return %c0_i32, %c0_i32_0 : i32, i32
  }
  func.func @transform_3(%arg0: i32) -> (i32, i32) {
    %c0_i32 = arith.constant 0 : i32
    %c0_i32_0 = arith.constant 0 : i32
    %c0_i32_1 = arith.constant 0 : i32
    return %c0_i32, %c0_i32_0 : i32, i32
  }
  func.func @transform_4(%arg0: i32) -> (i32, i32) {
    %c0_i32 = arith.constant 0 : i32
    %c0_i32_0 = arith.constant 0 : i32
    %c0_i32_1 = arith.constant 0 : i32
    return %c0_i32, %c0_i32_0 : i32, i32
  }
  func.func @transform_5(%arg0: i32) -> (i32, i32, i32) {
    %c0_i32 = arith.constant 0 : i32
    %c0_i32_0 = arith.constant 0 : i32
    %c0_i32_1 = arith.constant 0 : i32
    return %arg0, %c0_i32, %c0_i32_0 : i32, i32, i32
  }
}

</mosaic_0001>

<llo_original>
// kernel: tpu_custom_call.1
$region0: #{tpu_custom_call.1}
  #allocation0 [shape = 'u32[]', space=smem, size = 0x4, offset = 0x4, fixed_abs, tag = 'smem constant byte address 0x4 - core index']
  #allocation1 [shape = 'u32[144,128]{1,0:T(1,128)}', space=vmem, size = 0x12000, scoped, tag = 'internal scratch']
  %s0 = inlined_call_operand.vmem [shape: s32[2,8,1], index: 0, kind: input, shape index: {}]
  %s1 = inlined_call_operand.vmem [shape: f32[50,32], index: 1, kind: input, shape index: {}]
  %s2 = inlined_call_operand.vmem [shape: f32[8,32], index: 2, kind: input, shape index: {}]
  %s3 = inlined_call_operand.vmem [shape: f32[1,32], index: 3, kind: input, shape index: {}]
  %s4 = inlined_call_operand.vmem [shape: f32[1,32], index: 4, kind: input, shape index: {}]
  %s5 = inlined_call_operand.hbm [shape: f32[2,8,32], index: 5, kind: output, shape index: {}]
  %s6 = sld [smem:[#allocation0]]
  $region53: #{tpu_custom_call.1} parent=0
    _
  %s8 = ssub.s32 1, %s6
  %s9 = scalar_select 0, %s8, %s6
  $region1: #{tpu_custom_call.1} parent=0
    #allocation2 [shape = 'u8[8192]{0}', space=vmem, size = 0x2000, scoped, tag = 'output window, operand 0']
    #allocation3 [shape = 's32[2]{0}', space=sflag, size = 0x8, scoped, tag = 'scoped memory for tpu_custom_call.1']
    %10 = vsyncpa [#allocation3], 0
    %s11 = scalar_lea.sflag [#allocation3], 1
    %12 = vsyncpa %s11, 0
    loop: start=0, step=1, limit=4
    $region2: #{tpu_custom_call.1} parent=1 // loop_pre_header
      _
    $region3: #{tpu_custom_call.1} parent=1 // loop_header
      %s14 = sphi 0, %s18
      %p15 = scmp.ge.s32.totalorder %s14, 4
      %s24 = sphi 0, %s26
      %s27 = sphi 0, %s24
      %s28 = sphi 0, %s27
      %s44 = sphi 0, %s28
      %s48 = sphi 0, %s48
      %s50 = sphi 0, %s48
      %s51 = sphi 0, %s50
      %s65 = sphi 0, %s51
      %s69 = sphi 0, %s69
      %s71 = sphi 0, %s69
      %s72 = sphi 0, %s71
      %s86 = sphi 0, %s72
      %s90 = sphi 0, %s90
      %s92 = sphi 0, %s90
      %s93 = sphi 0, %s92
      %s107 = sphi 0, %s93
      %s111 = sphi 0, %s111
      %s113 = sphi 0, %s111
      %s114 = sphi 0, %s113
      %s128 = sphi 0, %s114
      %s134 = sphi 0, %s136
      %s137 = sphi 0, %s134
      %s138 = sphi 0, %s137
      %s154 = sphi 0, %s138
    $region4: #{tpu_custom_call.1} parent=1 // loop_header_branch
      %17 = sbr.rel (%p15) target = $region8
    $region5: #{tpu_custom_call.1} parent=1 // loop_body
      %s19 = ssub.s32 %s14, 1
      %s20 = ssub.s32 %s14, 2
      %s21 = sadd.s32 %s14, 1
      %s22 = ssub.s32 %s14, %s21
      %p23 = scmp.eq.s32.totalorder %s22, 0
      %s25 = sadd.s32 %s24, 1
      %s26 = scalar_select %p23, %s24, %s25
      %p29 = pneg %p23
      %p30 = scmp.eq.s32.totalorder %s14, 1
      %p31 = por %p29, %p30
      %p32 = scmp.ne.s32.totalorder %s24, %s27
      %p33 = scmp.eq.s32.totalorder %s14, 0
      %p34 = por %p32, %p33
      %p35 = scmp.ne.s32.totalorder %s24, %s27
      %p36 = scmp.eq.s32.totalorder %s19, 1
      %p37 = por %p35, %p36
      %p38 = scmp.ne.s32.totalorder %s27, %s28
      %p39 = scmp.eq.s32.totalorder %s19, 0
      %p40 = por %p38, %p39
      %p41 = scmp.ne.s32.totalorder %s27, %s28
      %p42 = scmp.eq.s32.totalorder %s20, 1
      %p43 = por %p41, %p42
      %p45 = scmp.ne.s32.totalorder %s28, %s44
      %p46 = scmp.eq.s32.totalorder %s20, 0
      %p47 = por %p45, %p46
      %s49 = sadd.s32 %s48, 1
      %p52 = scmp.eq.s32.totalorder %s14, 1
      %p53 = scmp.ne.s32.totalorder %s48, %s50
      %p54 = scmp.eq.s32.totalorder %s14, 0
      %p55 = por %p53, %p54
      %p56 = scmp.ne.s32.totalorder %s48, %s50
      %p57 = scmp.eq.s32.totalorder %s19, 1
      %p58 = por %p56, %p57
      %p59 = scmp.ne.s32.totalorder %s50, %s51
      %p60 = scmp.eq.s32.totalorder %s19, 0
      %p61 = por %p59, %p60
      %p62 = scmp.ne.s32.totalorder %s50, %s51
      %p63 = scmp.eq.s32.totalorder %s20, 1
      %p64 = por %p62, %p63
      %p66 = scmp.ne.s32.totalorder %s51, %s65
      %p67 = scmp.eq.s32.totalorder %s20, 0
      %p68 = por %p66, %p67
      %s70 = sadd.s32 %s69, 1
      %p73 = scmp.eq.s32.totalorder %s14, 1
      %p74 = scmp.ne.s32.totalorder %s69, %s71
      %p75 = scmp.eq.s32.totalorder %s14, 0
      %p76 = por %p74, %p75
      %p77 = scmp.ne.s32.totalorder %s69, %s71
      %p78 = scmp.eq.s32.totalorder %s19, 1
      %p79 = por %p77, %p78
      %p80 = scmp.ne.s32.totalorder %s71, %s72
      %p81 = scmp.eq.s32.totalorder %s19, 0
      %p82 = por %p80, %p81
      %p83 = scmp.ne.s32.totalorder %s71, %s72
      %p84 = scmp.eq.s32.totalorder %s20, 1
      %p85 = por %p83, %p84
      %p87 = scmp.ne.s32.totalorder %s72, %s86
      %p88 = scmp.eq.s32.totalorder %s20, 0
      %p89 = por %p87, %p88
      %s91 = sadd.s32 %s90, 1
      %p94 = scmp.eq.s32.totalorder %s14, 1
      %p95 = scmp.ne.s32.totalorder %s90, %s92
      %p96 = scmp.eq.s32.totalorder %s14, 0
      %p97 = por %p95, %p96
      %p98 = scmp.ne.s32.totalorder %s90, %s92
      %p99 = scmp.eq.s32.totalorder %s19, 1
      %p100 = por %p98, %p99
      %p101 = scmp.ne.s32.totalorder %s92, %s93
      %p102 = scmp.eq.s32.totalorder %s19, 0
      %p103 = por %p101, %p102
      %p104 = scmp.ne.s32.totalorder %s92, %s93
      %p105 = scmp.eq.s32.totalorder %s20, 1
      %p106 = por %p104, %p105
      %p108 = scmp.ne.s32.totalorder %s93, %s107
      %p109 = scmp.eq.s32.totalorder %s20, 0
      %p110 = por %p108, %p109
      %s112 = sadd.s32 %s111, 1
      %p115 = scmp.eq.s32.totalorder %s14, 1
      %p116 = scmp.ne.s32.totalorder %s111, %s113
      %p117 = scmp.eq.s32.totalorder %s14, 0
      %p118 = por %p116, %p117
      %p119 = scmp.ne.s32.totalorder %s111, %s113
      %p120 = scmp.eq.s32.totalorder %s19, 1
      %p121 = por %p119, %p120
      %p122 = scmp.ne.s32.totalorder %s113, %s114
      %p123 = scmp.eq.s32.totalorder %s19, 0
      %p124 = por %p122, %p123
      %p125 = scmp.ne.s32.totalorder %s113, %s114
      %p126 = scmp.eq.s32.totalorder %s20, 1
      %p127 = por %p125, %p126
      %p129 = scmp.ne.s32.totalorder %s114, %s128
      %p130 = scmp.eq.s32.totalorder %s20, 0
      %p131 = por %p129, %p130
      %s132 = ssub.s32 %s14, %s21
      %p133 = scmp.eq.s32.totalorder %s132, 0
      %s135 = sadd.s32 %s134, 1
      %s136 = scalar_select %p133, %s134, %s135
      %p139 = pneg %p133
      %p140 = scmp.eq.s32.totalorder %s14, 1
      %p141 = por %p139, %p140
      %p142 = scmp.ne.s32.totalorder %s134, %s137
      %p143 = scmp.eq.s32.totalorder %s14, 0
      %p144 = por %p142, %p143
      %p145 = scmp.ne.s32.totalorder %s134, %s137
      %p146 = scmp.eq.s32.totalorder %s19, 1
      %p147 = por %p145, %p146
      %p148 = scmp.ne.s32.totalorder %s137, %s138
      %p149 = scmp.eq.s32.totalorder %s19, 0
      %p150 = por %p148, %p149
      %p151 = scmp.ne.s32.totalorder %s137, %s138
      %p152 = scmp.eq.s32.totalorder %s20, 1
      %p153 = por %p151, %p152
      %p155 = scmp.ne.s32.totalorder %s138, %s154
      %p156 = scmp.eq.s32.totalorder %s20, 0
      %p157 = por %p155, %p156
      %p158 = scmp.le.s32.totalorder 1, %s14
      %p159 = scmp.lt.s32.totalorder %s14, 3
      %p160 = pnand %p158, %p159
      %p161 = pneg %p160
      // Predicated region
      $region9: #{tpu_custom_call.1} parent=5 // pred_check
        _
      $region10: #{tpu_custom_call.1} parent=5 // pred_check_branch
        %163 = sbr.rel (%p160) target = $region12
      $region11: #{tpu_custom_call.1} parent=5 // pred_region
        %s164 = ssub.s32 %s14, 1
        // Predicated region
        $region13: #{tpu_custom_call.1} parent=11 // pred_check
          %p165 = pneg %p61
        $region14: #{tpu_custom_call.1} parent=11 // pred_check_branch
          %167 = sbr.rel (%p165) target = $region16
        $region15: #{tpu_custom_call.1} parent=11 // pred_region
          _
        $region16: #{tpu_custom_call.1} parent=11 // pred_fallthru
          _
        // Predicated region
        $region17: #{tpu_custom_call.1} parent=11 // pred_check
          %p168 = pneg %p82
        $region18: #{tpu_custom_call.1} parent=11 // pred_check_branch
          %170 = sbr.rel (%p168) target = $region20
        $region19: #{tpu_custom_call.1} parent=11 // pred_region
          _
        $region20: #{tpu_custom_call.1} parent=11 // pred_fallthru
          _
        // Predicated region
        $region21: #{tpu_custom_call.1} parent=11 // pred_check
          %p171 = pneg %p103
        $region22: #{tpu_custom_call.1} parent=11 // pred_check_branch
          %173 = sbr.rel (%p171) target = $region24
        $region23: #{tpu_custom_call.1} parent=11 // pred_region
          _
        $region24: #{tpu_custom_call.1} parent=11 // pred_fallthru
          _
        // Predicated region
        $region25: #{tpu_custom_call.1} parent=11 // pred_check
          %p174 = pneg %p124
        $region26: #{tpu_custom_call.1} parent=11 // pred_check_branch
          %176 = sbr.rel (%p174) target = $region28
        $region27: #{tpu_custom_call.1} parent=11 // pred_region
          _
        $region28: #{tpu_custom_call.1} parent=11 // pred_fallthru
          _
      $region12: #{tpu_custom_call.1} parent=5 // pred_fallthru
        _
      %p177 = scmp.lt.s32.totalorder %s14, 2
      // Predicated region
      $region29: #{tpu_custom_call.1} parent=5 // pred_check
        %p178 = pneg %p177
      $region30: #{tpu_custom_call.1} parent=5 // pred_check_branch
        %180 = sbr.rel (%p178) target = $region32
      $region31: #{tpu_custom_call.1} parent=5 // pred_region
        // Predicated region
        $region33: #{tpu_custom_call.1} parent=31 // pred_check
          %p181 = pneg %p34
        $region34: #{tpu_custom_call.1} parent=31 // pred_check_branch
          %183 = sbr.rel (%p181) target = $region36
        $region35: #{tpu_custom_call.1} parent=31 // pred_region
          %p184 = scmp.lt.s32.totalorder %s14, 1
          %s185 = scalar_select %p184, %s14, 1
          %s186 = smul.addr %s185, 8
          %s187 = scalar_lea.vmem %s0, %s186
        $region36: #{tpu_custom_call.1} parent=31 // pred_fallthru
          _
      $region32: #{tpu_custom_call.1} parent=5 // pred_fallthru
        _
      %p188 = scmp.le.s32.totalorder 1, %s14
      %p189 = scmp.lt.s32.totalorder %s14, 3
      %p190 = pnand %p188, %p189
      %p191 = pneg %p190
      // Predicated region
      $region37: #{tpu_custom_call.1} parent=5 // pred_check
        _
      $region38: #{tpu_custom_call.1} parent=5 // pred_check_branch
        %193 = sbr.rel (%p190) target = $region40
      $region39: #{tpu_custom_call.1} parent=5 // pred_region
        %s194 = ssub.s32 %s14, 1
        %p195 = scmp.lt.s32.totalorder %s19, 1
        %s196 = scalar_select %p195, %s19, 1
        %s197 = smul.addr %s196, 8
        %s198 = scalar_lea.vmem %s0, %s197
        %p199 = pneg %p40
        %p200 = pneg %p37
        %p201 = pneg %p61
        %p202 = pneg %p58
        %p203 = pneg %p82
        %p204 = pneg %p79
        %p205 = pneg %p103
        %p206 = pneg %p100
        %p207 = pneg %p124
        %p208 = pneg %p121
        %p209 = pneg %p150
        %p210 = pneg %p147
        %s211 = sand.u32 %s137, 1
        %s212 = scalar_lea.sflag [#allocation3], %s211
        %s213 = sand.u32 %s137, 1
        %s214 = smul.addr %s213, 8
        %s215 = scalar_lea.vmem [#allocation2], %s214
        %p216 = scmp.lt.s32.totalorder %s19, 1
        %s217 = scalar_select %p216, %s19, 1
        %s218 = smul.addr %s217, 8
        %s219 = scalar_lea.vmem %s0, %s218
        %v220 = vlaneseq
        %v221 = vand.u32 %v220, 127
        %v222 = vld [vmem:[%s219] sm:$0xff]
        %223 = vset.pattern.permute.xlu0 0
        %224 = vperm.xlu0 %223, %v222
        %v225 = vpop.permute.xlu0 %224
        %vm226 = vcmp.eq.s32.totalorder %v225, %v221
        %v227 = vsel %vm226, 1, 0
        %v228 = vcvt.s32.f32 %v227
        %v229 = vld [vmem:[%s1] sm:$0xff]
        %v230 = vld [vmem:[%s1 + $0x8] sm:$0xff]
        %v231 = vld [vmem:[%s1 + $0x10] sm:$0xff]
        %v232 = vld [vmem:[%s1 + $0x18] sm:$0xff]
        %v233 = vld [vmem:[%s1 + $0x20] sm:$0xff]
        %v234 = vld [vmem:[%s1 + $0x28] sm:$0xff]
        %v235 = vld [vmem:[%s1 + $0x30] sm:$0x3]
        %v236 = vld [vmem:[%s2] sm:$0xff]
        %vm237 = vcmask 408576
        %v239 = vsel %vm237, %v228, 0
        %vm241 = vcmask 1041408
        %v243 = vsel %vm241, %v235, 0
        %245 = vmatprep.subr.mxu0 0.0
        %246 = vmatpush1.msra.mxu0 %v229
        %247 = vmatprep.subr.mxu0 0.0
        %248 = vmatpush1.msra.mxu0 %v230
        %249 = vmatprep.subr.mxu0 0.0
        %250 = vmatpush1.msra.mxu0 %v231
        %251 = vmatprep.subr.mxu0 0.0
        %252 = vmatpush1.msra.mxu0 %v232
        %253 = vmatprep.subr.mxu0 0.0
        %254 = vmatpush1.msra.mxu0 %v233
        %255 = vmatprep.subr.mxu0 0.0
        %256 = vmatpush1.msra.mxu0 %v234
        %257 = vmatprep.subr.mxu0 0.0
        %258 = vmatpush1.msra.mxu0 %v243
        %259 = vmatprep.subr.mxu0 0.0
        %260 = vmatpush1.msra.mxu0 0.0
        %261 = vmatprep.subr.mxu0 0.0
        %262 = vmatpush1.msra.mxu0 0.0
        %263 = vmatprep.subr.mxu0 0.0
        %264 = vmatpush1.msra.mxu0 0.0
        %265 = vmatprep.subr.mxu0 0.0
        %266 = vmatpush1.msra.mxu0 0.0
        %267 = vmatprep.subr.mxu0 0.0
        %268 = vmatpush1.msra.mxu0 0.0
        %269 = vmatprep.subr.mxu0 0.0
        %270 = vmatpush1.msra.mxu0 0.0
        %271 = vmatprep.subr.mxu0 0.0
        %272 = vmatpush1.msra.mxu0 0.0
        %273 = vmatprep.subr.mxu0 0.0
        %274 = vmatpush1.msra.mxu0 0.0
        %275 = vmatprep.subr.mxu0 0.0
        %276 = vmatpush1.msra.mxu0 0.0
        %277 = vmatprep.subr.mxu0 0.0
        %278 = vmatpush1.msra.mxu0 0.0
        %279 = vmatprep.subr.mxu0 0.0
        %280 = vmatpush1.msra.mxu0 0.0
        %281 = vmatprep.subr.mxu0 0.0
        %282 = vmatpush1.msra.mxu0 0.0
        %283 = vmatprep.subr.mxu0 0.0
        %284 = vmatpush1.msra.mxu0 0.0
        %285 = vmatprep.subr.mxu0 0.0
        %286 = vmatpush1.msra.mxu0 0.0
        %287 = vmatprep.subr.mxu0 0.0
        %288 = vmatpush1.msra.mxu0 0.0
        %289 = vmatprep.subr.mxu0 0.0
        %290 = vmatpush1.msra.mxu0 0.0
        %291 = vmatprep.subr.mxu0 0.0
        %292 = vmatpush1.msra.mxu0 0.0
        %293 = vmatprep.subr.mxu0 0.0
        %294 = vmatpush1.msra.mxu0 0.0
        %295 = vmatprep.subr.mxu0 0.0
        %296 = vmatpush1.msra.mxu0 0.0
        %297 = vmatprep.subr.mxu0 0.0
        %298 = vmatpush1.msra.mxu0 0.0
        %299 = vmatprep.subr.mxu0 0.0
        %300 = vmatpush1.msra.mxu0 0.0
        %301 = vmatprep.subr.mxu0 0.0
        %302 = vmatpush1.msra.mxu0 0.0
        %303 = vmatprep.subr.mxu0 0.0
        %304 = vmatpush1.msra.mxu0 0.0
        %305 = vmatprep.subr.mxu0 0.0
        %306 = vmatpush1.msra.mxu0 0.0
        %307 = vmatprep.subr.mxu0 0.0
        %308 = vmatpush1.msra.mxu0 0.0
        %309 = vmatprep.mubr.f32.mxu0 0.0
        %310 = vmatmul.mubr.f32.gmra.mrb[0].mxu0 %v239
        %v311 = vpop.f32.mrb[0].mxu0
        %v312 = vadd.f32 %v236, %v311
        %v313 = vpop.f32.mrb[0].mxu0
        %314 = vdwg.mxu0
        %v315 = vld [vmem:[%s3] sm:$0x1]
        %v316 = vld [vmem:[%s4] sm:$0x1]
        %vm317 = vcmask 261120
        %v318 = vsel %vm317, %v312, 0.0
        %319 = vadd.xlane.f32.xlu0 %v318
        %v320 = vpop.xlane.xlu0 %319
        %v321 = vrcp.pop 32.0
        %v322 = vmul.f32 %v320, %v321
        %v323 = vsub.f32 %v312, %v322
        %v324 = vmul.f32 %v323, %v323
        %v325 = vsel %vm317, %v324, 0.0
        %326 = vadd.xlane.f32.xlu0 %v325
        %v327 = vpop.xlane.xlu0 %326
        %v328 = vmul.f32 %v327, %v321
        %v329 = vadd.f32 %v328, 1e-06
        %v330 = vrsqrt.pop %v329
        %v331 = vmul.f32 %v323, %v330
        %v333 = vlaneseq
        %v334 = vshrl.u32 %v333, 7
        %v335 = vsub.s32 0, %v334
        %v336 = vrot.slane %v315, %v335
        %v338 = vmul.f32 %v331, %v336
        %v340 = vlaneseq
        %v341 = vshrl.u32 %v340, 7
        %v342 = vsub.s32 0, %v341
        %v343 = vrot.slane %v316, %v342
        %v345 = vadd.f32 %v338, %v343
        %346 = vst.msk [vmem:[%s215] sm:$0xff] %vm317, %v345
        %s347 = sand.u32 %s137, 1
        %s348 = scalar_lea.sflag [#allocation3], %s347
        %s349 = sand.u32 %s137, 1
        %s350 = smul.addr %s349, 8
        %s351 = scalar_lea.vmem [#allocation2], %s350
        // Predicated region
        $region41: #{tpu_custom_call.1} parent=39 // pred_check
          %p352 = pneg %p147
        $region42: #{tpu_custom_call.1} parent=39 // pred_check_branch
          %354 = sbr.rel (%p352) target = $region44
        $region43: #{tpu_custom_call.1} parent=39 // pred_region
          %s356 = ssub.s32 128, 128
          %357 = vsyncadd %s348, %s356
          %s358 = smul.addr %s19, 128
          %s359 = scalar_lea.hbm %s5, %s358
          %s361 = sshll.u32 %s351, 4
          %s362 = int_to_ptr.vmem [resolvable:$true] %s361
          %364 = dma.vmem_to_hbm [thread:$0]  %s362, 128, %s359, %s348
        $region44: #{tpu_custom_call.1} parent=39 // pred_fallthru
          _
      $region40: #{tpu_custom_call.1} parent=5 // pred_fallthru
        _
      %p365 = scmp.le.s32.totalorder 2, %s14
      // Predicated region
      $region45: #{tpu_custom_call.1} parent=5 // pred_check
        %p366 = pneg %p365
      $region46: #{tpu_custom_call.1} parent=5 // pred_check_branch
        %368 = sbr.rel (%p366) target = $region48
      $region47: #{tpu_custom_call.1} parent=5 // pred_region
        %s369 = ssub.s32 %s14, 2
        // Predicated region
        $region49: #{tpu_custom_call.1} parent=47 // pred_check
          %p370 = pneg %p153
        $region50: #{tpu_custom_call.1} parent=47 // pred_check_branch
          %372 = sbr.rel (%p370) target = $region52
        $region51: #{tpu_custom_call.1} parent=47 // pred_region
          %s373 = sand.u32 %s138, 1
          %s374 = scalar_lea.sflag [#allocation3], %s373
          %s375 = sand.u32 %s138, 1
          %s376 = smul.addr %s375, 8
          %s377 = scalar_lea.vmem [#allocation2], %s376
          %378 = dma.done %s374, 128
        $region52: #{tpu_custom_call.1} parent=47 // pred_fallthru
          _
      $region48: #{tpu_custom_call.1} parent=5 // pred_fallthru
        _
    $region6: #{tpu_custom_call.1} parent=1 // loop_footer
      %s18 = sadd.s32 1, %s14
    $region7: #{tpu_custom_call.1} parent=1 // loop_footer_branch
      %13 = sbr.rel target = $region3
    $region8: #{tpu_custom_call.1} parent=1 // loop_exit
      _
    %379 = vsyncpa [#allocation3], 1
    %s380 = scalar_lea.sflag [#allocation3], 1
    %381 = vsyncpa %s380, 1

</llo_original>
